<compile_context>
chip_gen: v7x
topology: tpu7x:2x2x1
jax: 0.10.0
libtpu: 0.0.40
codegen_flags: <defaults>
</compile_context>

<pallas_src>
import functools

import jax
import jax.numpy as jnp
from jax.experimental import pallas as pl
from jax.experimental.pallas import tpu as pltpu


def _sdc_kernel(x_ref, w_ref, m_ref, o_ref, *, Cin, NHW, shifts):
    # x_ref: (Cin, N*HW)   channels on sublanes, all images packed along lanes
    # w_ref: (Cout, K_pad) fused weights: 5 transposed 1x1 kernels, 5 biases, 0-pad
    # m_ref: (R, N*HW)     rows 0..4 = [ones, m1, m2, m3, m4], rows 5..R-1 = 0
    # o_ref: (Cout, N*HW)  lane-dense output
    x = x_ref[...]
    masks = m_ref[...]

    taps = [x]                                   # tap (0,0): always in bounds
    for t in range(1, 5):
        # view[:, p] = x[:, p + shift]; wrapped / cross-image entries are
        # killed by the matching mask row (they only land on masked positions).
        v = pltpu.roll(x, shift=(-shifts[t]) % NHW, axis=1)
        taps.append(v * masks[t:t + 1, :])

    # Register-resident RHS, K_pad = 5*Cin + R rows (zero rows pad K to 8n).
    rhs = jnp.concatenate(taps + [masks], axis=0)          # (K_pad, N*HW)

    # Single fused MXU dot; f32 accumulation regardless of compute dtype.
    o_ref[...] = jnp.dot(w_ref[...], rhs,
                         preferred_element_type=jnp.float32).astype(o_ref.dtype)


def sdc_conv2d1x1s_3_ang2(x_nchw, w_all, b_all, *, compute_dtype=jnp.float32):
    """Forward pass.

    x_nchw: (N, Cin, H, W); w_all: (5, Cin, Cout); b_all: (5, Cout).
    compute_dtype: jnp.float32 (exact, matches PyTorch) or jnp.bfloat16
    (v6e/v7x MXU fast path, f32 accumulation).
    """
    N, Cin, H, W = x_nchw.shape
    Cout = w_all.shape[-1]
    HW = H * W
    NHW = N * HW
    # Flattened within-image shifts di*W+dj for taps (0,0),(1,-1),(1,1),(-1,1),(1,0).
    shifts = (0, W - 1, W + 1, 1 - W, W)

    K_pad = ((5 * Cin + 5 + 7) // 8) * 8          # explicit sublane-aligned K
    R = K_pad - 5 * Cin                           # mask-slab rows (>= 5)

    # Channels on sublanes, images packed along lanes (tiny wrapper transpose).
    x2 = jnp.transpose(x_nchw, (1, 0, 2, 3)).reshape(Cin, NHW).astype(compute_dtype)

    # Batch-invariant in-bounds masks, hoisted out of the kernel.  Computed
    # from the within-image index q so cross-image roll wrap is always masked.
    q = jnp.arange(HW, dtype=jnp.int32)
    row, col = q // W, q % W
    m1 = (row <= H - 2) & (col >= 1)              # tap (+1, -1)
    m2 = (row <= H - 2) & (col <= W - 2)          # tap (+1, +1)
    m3 = (row >= 1) & (col <= W - 2)              # tap (-1, +1)
    m4 = (row <= H - 2)                           # tap (+1,  0)
    mask_rows = [jnp.ones((HW,), bool), m1, m2, m3, m4]
    mask_rows += [jnp.zeros((HW,), bool)] * (R - 5)
    masks = jnp.tile(jnp.stack(mask_rows, axis=0), (1, N)).astype(compute_dtype)

    # Fused weight (Cout, K_pad): cols [k*Cin:(k+1)*Cin] = W_k^T, col 5*Cin+k = b_k,
    # remaining columns zero (matching the zero mask rows).
    w_cols = jnp.transpose(w_all, (2, 0, 1)).reshape(Cout, 5 * Cin)
    b_cols = jnp.transpose(b_all, (1, 0))                             # (Cout, 5)
    w_fused = jnp.concatenate(
        [w_cols, b_cols, jnp.zeros((Cout, R - 5), w_cols.dtype)],
        axis=1).astype(compute_dtype)                                 # (Cout, K_pad)

    kernel = functools.partial(_sdc_kernel, Cin=Cin, NHW=NHW, shifts=shifts)
    out2 = pl.pallas_call(
        kernel,
        out_shape=jax.ShapeDtypeStruct((Cout, NHW), jnp.float32),
        grid=(1,),                                # single step: whole batch at once
        in_specs=[
            pl.BlockSpec((Cin, NHW), lambda i: (0, 0)),
            pl.BlockSpec((Cout, K_pad), lambda i: (0, 0)),   # constant: 1 weight DMA
            pl.BlockSpec((R, NHW), lambda i: (0, 0)),
        ],
        out_specs=pl.BlockSpec((Cout, NHW), lambda i: (0, 0)),
        # No scratch_shapes (RHS lives in vregs), no dimension_semantics
        # (nothing to shard across TensorCores with a single grid step).
    )(x2, w_fused, masks)

    # Lane-packed (Cout, N*HW) -> NCHW; tiny (8 KB) wrapper-side relayout.
    return out2.reshape(Cout, N, H, W).transpose(1, 0, 2, 3)


def reference(x_nchw, w_all, b_all):
    """Pure-JAX transcription of the PyTorch forward (5 convs + pads + sum + crop)."""
    ys = []
    for k in range(5):
        y = jnp.einsum('nchw,co->nohw', x_nchw, w_all[k]) \
            + b_all[k][None, :, None, None]
        ys.append(y)
    # F.pad order [left, right, top, bottom] -> ((top, bottom), (left, right))
    hw_pads = [((1, 1), (1, 1)), ((0, 2), (2, 0)), ((0, 2), (0, 2)),
               ((2, 0), (0, 2)), ((0, 2), (1, 1))]
    total = 0.0
    for y, (ph, pw) in zip(ys, hw_pads):
        total = total + jnp.pad(y, ((0, 0), (0, 0), ph, pw))
    return total[:, :, 1:-1, 1:-1]


if __name__ == "__main__":
    key = jax.random.PRNGKey(0)
    k1, k2, k3 = jax.random.split(key, 3)

    N, Cin, Cout, H, W = 2, 4, 4, 16, 16
    x = jax.random.normal(k1, (N, Cin, H, W), jnp.float32)
    # Deterministic synthetic parameters for the five 1x1 convs (weights + bias).
    w_all = jax.random.normal(k2, (5, Cin, Cout), jnp.float32) * 0.2
    b_all = jax.random.normal(k3, (5, Cout), jnp.float32) * 0.1

    ref = reference(x, w_all, b_all)

    # f32 path: exact semantics of the PyTorch module.
    fwd_f32 = jax.jit(functools.partial(sdc_conv2d1x1s_3_ang2,
                                        compute_dtype=jnp.float32))
    out = jax.block_until_ready(fwd_f32(x, w_all, b_all))
    assert out.shape == (N, Cout, H, W), out.shape
    assert jnp.allclose(out, ref, atol=1e-4, rtol=1e-4), \
        float(jnp.max(jnp.abs(out - ref)))

    # bf16 MXU fast path (v6e/v7x); f32 accumulation, looser tolerance vs f32 ref.
    fwd_bf16 = jax.jit(functools.partial(sdc_conv2d1x1s_3_ang2,
                                         compute_dtype=jnp.bfloat16))
    out_bf = jax.block_until_ready(fwd_bf16(x, w_all, b_all))
    assert jnp.allclose(out_bf, ref, atol=5e-2, rtol=5e-2), \
        float(jnp.max(jnp.abs(out_bf - ref)))

    print("KERNEL_OK")
</pallas_src>

<mosaic_0001>
module attributes {stable_mosaic.version = 11 : i64} {
  func.func @_sdc_kernel(%arg0: i32, %arg1: memref<4x512xf32, #tpu.memory_space<vmem>>, %arg2: memref<4x32xf32, #tpu.memory_space<vmem>>, %arg3: memref<12x512xf32, #tpu.memory_space<vmem>>, %arg4: memref<4x512xf32, #tpu.memory_space<vmem>>) attributes {dimension_semantics = [#tpu.dimension_semantics<arbitrary>], iteration_bounds = array<i64: 1>, scalar_prefetch = 0 : i64, scratch_operands = 0 : i64, tpu.core_type = #tpu.core_type<tc>, window_params = [{pipeline_mode = #tpu.pipeline_mode<synchronous>, transform_indices = @transform_0, window_bounds = array<i64: 4, 512>}, {pipeline_mode = #tpu.pipeline_mode<synchronous>, transform_indices = @transform_1, window_bounds = array<i64: 4, 32>}, {pipeline_mode = #tpu.pipeline_mode<synchronous>, transform_indices = @transform_2, window_bounds = array<i64: 12, 512>}, {pipeline_mode = #tpu.pipeline_mode<synchronous>, transform_indices = @transform_3, window_bounds = array<i64: 4, 512>}]} {
    %c0 = arith.constant 0 : index
    %c0_0 = arith.constant 0 : index
    %0 = vector.load %arg1[%c0, %c0_0] : memref<4x512xf32, #tpu.memory_space<vmem>>, vector<4x512xf32>
    %c0_1 = arith.constant 0 : index
    %c0_2 = arith.constant 0 : index
    %1 = vector.load %arg3[%c0_1, %c0_2] : memref<12x512xf32, #tpu.memory_space<vmem>>, vector<12x512xf32>
    %c497_i32 = arith.constant 497 : i32
    %2 = tpu.dynamic_rotate %0 by %c497_i32 dim 1 : vector<4x512xf32>, i32 -> vector<4x512xf32>
    %3 = vector.extract_strided_slice %1 {offsets = [1, 0], sizes = [1, 512], strides = [1, 1]} : vector<12x512xf32> to vector<1x512xf32>
    %4 = vector.broadcast %3 : vector<1x512xf32> to vector<4x512xf32>
    %5 = arith.mulf %2, %4 : vector<4x512xf32>
    %c495_i32 = arith.constant 495 : i32
    %6 = tpu.dynamic_rotate %0 by %c495_i32 dim 1 : vector<4x512xf32>, i32 -> vector<4x512xf32>
    %7 = vector.extract_strided_slice %1 {offsets = [2, 0], sizes = [1, 512], strides = [1, 1]} : vector<12x512xf32> to vector<1x512xf32>
    %8 = vector.broadcast %7 : vector<1x512xf32> to vector<4x512xf32>
    %9 = arith.mulf %6, %8 : vector<4x512xf32>
    %c15_i32 = arith.constant 15 : i32
    %10 = tpu.dynamic_rotate %0 by %c15_i32 dim 1 : vector<4x512xf32>, i32 -> vector<4x512xf32>
    %11 = vector.extract_strided_slice %1 {offsets = [3, 0], sizes = [1, 512], strides = [1, 1]} : vector<12x512xf32> to vector<1x512xf32>
    %12 = vector.broadcast %11 : vector<1x512xf32> to vector<4x512xf32>
    %13 = arith.mulf %10, %12 : vector<4x512xf32>
    %c496_i32 = arith.constant 496 : i32
    %14 = tpu.dynamic_rotate %0 by %c496_i32 dim 1 : vector<4x512xf32>, i32 -> vector<4x512xf32>
    %15 = vector.extract_strided_slice %1 {offsets = [4, 0], sizes = [1, 512], strides = [1, 1]} : vector<12x512xf32> to vector<1x512xf32>
    %16 = vector.broadcast %15 : vector<1x512xf32> to vector<4x512xf32>
    %17 = arith.mulf %14, %16 : vector<4x512xf32>
    %18 = tpu.concatenate %0, %5, %9, %13, %17, %1 in 0 : vector<4x512xf32>, vector<4x512xf32>, vector<4x512xf32>, vector<4x512xf32>, vector<4x512xf32>, vector<12x512xf32> -> vector<32x512xf32>
    %c0_3 = arith.constant 0 : index
    %c0_4 = arith.constant 0 : index
    %19 = vector.load %arg2[%c0_3, %c0_4] : memref<4x32xf32, #tpu.memory_space<vmem>>, vector<4x32xf32>
    %cst = arith.constant dense<0.000000e+00> : vector<4x512xf32>
    %20 = tpu.matmul %19, %18, %cst {dimension_numbers = #tpu.dot_dimension_numbers<[1], [0], [0], [1], [0, 0, 1, 1], [], []>} : vector<4x32xf32>, vector<32x512xf32>, vector<4x512xf32> -> vector<4x512xf32>
    %c0_5 = arith.constant 0 : index
    %c0_6 = arith.constant 0 : index
    %21 = vector.load %arg4[%c0_5, %c0_6] : memref<4x512xf32, #tpu.memory_space<vmem>>, vector<4x512xf32>
    tpu.vector_store %arg4[%c0_5, %c0_6], %20 {strides = array<i32>} : memref<4x512xf32, #tpu.memory_space<vmem>>, vector<4x512xf32>,
    return
  }
  func.func @transform_0(%arg0: i32) -> (i32, i32) {
    %c0_i32 = arith.constant 0 : i32
    %c0_i32_0 = arith.constant 0 : i32
    %c0_i32_1 = arith.constant 0 : i32
    return %c0_i32, %c0_i32_0 : i32, i32
  }
  func.func @transform_1(%arg0: i32) -> (i32, i32) {
    %c0_i32 = arith.constant 0 : i32
    %c0_i32_0 = arith.constant 0 : i32
    %c0_i32_1 = arith.constant 0 : i32
    return %c0_i32, %c0_i32_0 : i32, i32
  }
  func.func @transform_2(%arg0: i32) -> (i32, i32) {
    %c0_i32 = arith.constant 0 : i32
    %c0_i32_0 = arith.constant 0 : i32
    %c0_i32_1 = arith.constant 0 : i32
    return %c0_i32, %c0_i32_0 : i32, i32
  }
  func.func @transform_3(%arg0: i32) -> (i32, i32) {
    %c0_i32 = arith.constant 0 : i32
    %c0_i32_0 = arith.constant 0 : i32
    %c0_i32_1 = arith.constant 0 : i32
    return %c0_i32, %c0_i32_0 : i32, i32
  }
}

</mosaic_0001>

<llo_original>
// kernel: sdc_conv2d1x1s_3_ang2.1
$region0: #{sdc_conv2d1x1s_3_ang2.1}
  #allocation0 [shape = 'u32[]', space=smem, size = 0x4, offset = 0x4, fixed_abs, tag = 'smem constant byte address 0x4 - core index']
  #allocation1 [shape = 'u32[144,128]{1,0:T(1,128)}', space=vmem, size = 0x12000, scoped, tag = 'internal scratch']
  %s0 = inlined_call_operand.vmem [shape: f32[4,512], index: 0, kind: input, shape index: {}]
  %s1 = inlined_call_operand.vmem [shape: f32[4,32], index: 1, kind: input, shape index: {}]
  %s2 = inlined_call_operand.vmem [shape: f32[12,512], index: 2, kind: input, shape index: {}]
  %s3 = inlined_call_operand.vmem [shape: f32[4,512], index: 3, kind: output, shape index: {}]
  %s4 = sld [smem:[#allocation0]]
  $region22: #{sdc_conv2d1x1s_3_ang2.1} parent=0
    _
  %s6 = ssub.s32 1, %s4
  %s7 = scalar_select 0, %s6, %s4
  // Predicated region
  $region2: #{sdc_conv2d1x1s_3_ang2.1} parent=0 // pred_check
    _
  $region3: #{sdc_conv2d1x1s_3_ang2.1} parent=0 // pred_check_branch
    %9 = sbr.rel (0) target = $region5
  $region4: #{sdc_conv2d1x1s_3_ang2.1} parent=0 // pred_region
    _
  $region5: #{sdc_conv2d1x1s_3_ang2.1} parent=0 // pred_fallthru
    _
  // Predicated region
  $region6: #{sdc_conv2d1x1s_3_ang2.1} parent=0 // pred_check
    _
  $region7: #{sdc_conv2d1x1s_3_ang2.1} parent=0 // pred_check_branch
    %11 = sbr.rel (0) target = $region9
  $region8: #{sdc_conv2d1x1s_3_ang2.1} parent=0 // pred_region
    _
  $region9: #{sdc_conv2d1x1s_3_ang2.1} parent=0 // pred_fallthru
    _
  // Predicated region
  $region10: #{sdc_conv2d1x1s_3_ang2.1} parent=0 // pred_check
    _
  $region11: #{sdc_conv2d1x1s_3_ang2.1} parent=0 // pred_check_branch
    %13 = sbr.rel (0) target = $region13
  $region12: #{sdc_conv2d1x1s_3_ang2.1} parent=0 // pred_region
    _
  $region13: #{sdc_conv2d1x1s_3_ang2.1} parent=0 // pred_fallthru
    _
  %v14 = vld [vmem:[%s0] sm:$0xff]
  %v15 = vld [vmem:[%s0 + $0x8] sm:$0xff]
  %v16 = vld [vmem:[%s2] sm:$0xff]
  %v17 = vld [vmem:[%s2 + $0x8] sm:$0xff]
  %v18 = vld [vmem:[%s2 + $0x10] sm:$0xff]
  %v19 = vld [vmem:[%s2 + $0x18] sm:$0xff]
  %v20 = vld [vmem:[%s2 + $0x20] sm:$0xf]
  %v21 = vld [vmem:[%s2 + $0x28] sm:$0xf]
  %v22 = vld [vmem:[%s2 + $0x30] sm:$0xf]
  %v23 = vld [vmem:[%s2 + $0x38] sm:$0xf]
  %v26 = vcombine.high %v14, %v14
  %v27 = vcombine.high %v15, %v15
  %30 = vrot.lane.b32.xlu0 %v14, 113
  %v31 = vpop.permute.xlu0 %30
  %32 = vrot.lane.b32.xlu0 %v26, 113
  %v33 = vpop.permute.xlu0 %32
  %34 = vrot.lane.b32.xlu0 %v15, 113
  %v35 = vpop.permute.xlu0 %34
  %36 = vrot.lane.b32.xlu0 %v27, 113
  %v37 = vpop.permute.xlu0 %36
  %v38 = vlaneseq
  %v39 = vand.u32 %v38, 127
  %vm40 = vcmp.lt.s32.totalorder %v39, 113
  %v41 = vsel %vm40, %v35, %v37
  %v42 = vsel %vm40, %v33, %v35
  %v43 = vsel %vm40, %v31, %v33
  %v44 = vsel %vm40, %v37, %v31
  %v45 = vlaneseq
  %v46 = vshrl.u32 %v45, 7
  %v47 = vsub.s32 1, %v46
  %v48 = vrot.slane %v16, %v47
  %v49 = vlaneseq
  %v50 = vshrl.u32 %v49, 7
  %v51 = vsub.s32 1, %v50
  %v52 = vrot.slane %v17, %v51
  %v53 = vlaneseq
  %v54 = vshrl.u32 %v53, 7
  %v55 = vsub.s32 1, %v54
  %v56 = vrot.slane %v18, %v55
  %v57 = vlaneseq
  %v58 = vshrl.u32 %v57, 7
  %v59 = vsub.s32 1, %v58
  %v60 = vrot.slane %v19, %v59
  %v61 = vmul.f32 %v43, %v48
  %v62 = vmul.f32 %v42, %v52
  %v63 = vmul.f32 %v41, %v56
  %v64 = vmul.f32 %v44, %v60
  %65 = vrot.lane.b32.xlu0 %v14, 111
  %v66 = vpop.permute.xlu0 %65
  %67 = vrot.lane.b32.xlu0 %v26, 111
  %v68 = vpop.permute.xlu0 %67
  %69 = vrot.lane.b32.xlu0 %v15, 111
  %v70 = vpop.permute.xlu0 %69
  %71 = vrot.lane.b32.xlu0 %v27, 111
  %v72 = vpop.permute.xlu0 %71
  %vm73 = vcmp.lt.s32.totalorder %v39, 111
  %v74 = vsel %vm73, %v70, %v72
  %v75 = vsel %vm73, %v68, %v70
  %v76 = vsel %vm73, %v66, %v68
  %v77 = vsel %vm73, %v72, %v66
  %v78 = vlaneseq
  %v79 = vshrl.u32 %v78, 7
  %v80 = vsub.s32 2, %v79
  %v81 = vrot.slane %v16, %v80
  %v82 = vlaneseq
  %v83 = vshrl.u32 %v82, 7
  %v84 = vsub.s32 2, %v83
  %v85 = vrot.slane %v17, %v84
  %v86 = vlaneseq
  %v87 = vshrl.u32 %v86, 7
  %v88 = vsub.s32 2, %v87
  %v89 = vrot.slane %v18, %v88
  %v90 = vlaneseq
  %v91 = vshrl.u32 %v90, 7
  %v92 = vsub.s32 2, %v91
  %v93 = vrot.slane %v19, %v92
  %v94 = vmul.f32 %v76, %v81
  %v95 = vmul.f32 %v75, %v85
  %v96 = vmul.f32 %v74, %v89
  %v97 = vmul.f32 %v77, %v93
  %98 = vrot.lane.b32.xlu0 %v14, 15
  %v99 = vpop.permute.xlu0 %98
  %100 = vrot.lane.b32.xlu0 %v26, 15
  %v101 = vpop.permute.xlu0 %100
  %102 = vrot.lane.b32.xlu0 %v15, 15
  %v103 = vpop.permute.xlu0 %102
  %104 = vrot.lane.b32.xlu0 %v27, 15
  %v105 = vpop.permute.xlu0 %104
  %vm106 = vcmp.lt.s32.totalorder %v39, 15
  %v107 = vsel %vm106, %v103, %v105
  %v108 = vsel %vm106, %v101, %v103
  %v109 = vsel %vm106, %v99, %v101
  %v110 = vsel %vm106, %v105, %v99
  %v111 = vlaneseq
  %v112 = vshrl.u32 %v111, 7
  %v113 = vsub.s32 3, %v112
  %v114 = vrot.slane %v16, %v113
  %v115 = vlaneseq
  %v116 = vshrl.u32 %v115, 7
  %v117 = vsub.s32 3, %v116
  %v118 = vrot.slane %v17, %v117
  %v119 = vlaneseq
  %v120 = vshrl.u32 %v119, 7
  %v121 = vsub.s32 3, %v120
  %v122 = vrot.slane %v18, %v121
  %v123 = vlaneseq
  %v124 = vshrl.u32 %v123, 7
  %v125 = vsub.s32 3, %v124
  %v126 = vrot.slane %v19, %v125
  %v127 = vmul.f32 %v110, %v114
  %v128 = vmul.f32 %v109, %v118
  %v129 = vmul.f32 %v108, %v122
  %v130 = vmul.f32 %v107, %v126
  %131 = vrot.lane.b32.xlu0 %v14, 112
  %v132 = vpop.permute.xlu0 %131
  %133 = vrot.lane.b32.xlu0 %v26, 112
  %v134 = vpop.permute.xlu0 %133
  %135 = vrot.lane.b32.xlu0 %v15, 112
  %v136 = vpop.permute.xlu0 %135
  %137 = vrot.lane.b32.xlu0 %v27, 112
  %v138 = vpop.permute.xlu0 %137
  %vm139 = vcmp.lt.s32.totalorder %v39, 112
  %v140 = vsel %vm139, %v136, %v138
  %v141 = vsel %vm139, %v134, %v136
  %v142 = vsel %vm139, %v132, %v134
  %v143 = vsel %vm139, %v138, %v132
  %v144 = vlaneseq
  %v145 = vshrl.u32 %v144, 7
  %v146 = vsub.s32 4, %v145
  %v147 = vrot.slane %v16, %v146
  %v148 = vlaneseq
  %v149 = vshrl.u32 %v148, 7
  %v150 = vsub.s32 4, %v149
  %v151 = vrot.slane %v17, %v150
  %v152 = vlaneseq
  %v153 = vshrl.u32 %v152, 7
  %v154 = vsub.s32 4, %v153
  %v155 = vrot.slane %v18, %v154
  %v156 = vlaneseq
  %v157 = vshrl.u32 %v156, 7
  %v158 = vsub.s32 4, %v157
  %v159 = vrot.slane %v19, %v158
  %v160 = vmul.f32 %v142, %v147
  %v161 = vmul.f32 %v141, %v151
  %v162 = vmul.f32 %v140, %v155
  %v163 = vmul.f32 %v143, %v159
  %v168 = vrot.slane %v61, 4
  %v169 = vrot.slane %v62, 4
  %v170 = vrot.slane %v63, 4
  %v171 = vrot.slane %v64, 4
  %v180 = vrot.slane %v127, 4
  %v181 = vrot.slane %v128, 4
  %v182 = vrot.slane %v129, 4
  %v183 = vrot.slane %v130, 4
  %vm196 = vcmask 1043456
  %v197 = vrot.slane %v16, 4
  %v198 = vrot.slane %v17, 4
  %v199 = vrot.slane %v18, 4
  %v200 = vrot.slane %v19, 4
  %v201 = vrot.slane %v20, 4
  %v202 = vsel %vm196, %v197, %v201
  %v203 = vrot.slane %v21, 4
  %v204 = vsel %vm196, %v198, %v203
  %v205 = vrot.slane %v22, 4
  %v206 = vsel %vm196, %v199, %v205
  %v207 = vrot.slane %v23, 4
  %v208 = vsel %vm196, %v200, %v207
  %v217 = vsel %vm196, %v14, %v168
  %v218 = vsel %vm196, %v26, %v169
  %v219 = vsel %vm196, %v15, %v170
  %v220 = vsel %vm196, %v27, %v171
  %v221 = vsel %vm196, %v94, %v180
  %v222 = vsel %vm196, %v95, %v181
  %v223 = vsel %vm196, %v96, %v182
  %v224 = vsel %vm196, %v97, %v183
  %v225 = vsel %vm196, %v160, %v197
  %v226 = vsel %vm196, %v161, %v198
  %v227 = vsel %vm196, %v162, %v199
  %v228 = vsel %vm196, %v163, %v200
  %v229 = vld [vmem:[%s1] sm:$0xf]
  %vm230 = vcmask 261120
  %v232 = vsel %vm230, %v229, 0
  %234 = vmatprep.subr.mxu0 %v218
  %235 = vmatpush1.msra.mxu0 %v217
  %236 = vmatprep.subr.mxu0 %v222
  %237 = vmatpush1.msra.mxu0 %v221
  %238 = vmatprep.subr.mxu0 %v226
  %239 = vmatpush1.msra.mxu0 %v225
  %240 = vmatprep.subr.mxu0 %v204
  %241 = vmatpush1.msra.mxu0 %v202
  %242 = vmatprep.subr.mxu0 0.0
  %243 = vmatpush1.msra.mxu0 0.0
  %244 = vmatprep.subr.mxu0 0.0
  %245 = vmatpush1.msra.mxu0 0.0
  %246 = vmatprep.subr.mxu0 0.0
  %247 = vmatpush1.msra.mxu0 0.0
  %248 = vmatprep.subr.mxu0 0.0
  %249 = vmatpush1.msra.mxu0 0.0
  %250 = vmatprep.subr.mxu0 0.0
  %251 = vmatpush1.msra.mxu0 0.0
  %252 = vmatprep.subr.mxu0 0.0
  %253 = vmatpush1.msra.mxu0 0.0
  %254 = vmatprep.subr.mxu0 0.0
  %255 = vmatpush1.msra.mxu0 0.0
  %256 = vmatprep.subr.mxu0 0.0
  %257 = vmatpush1.msra.mxu0 0.0
  %258 = vmatprep.subr.mxu0 0.0
  %259 = vmatpush1.msra.mxu0 0.0
  %260 = vmatprep.subr.mxu0 0.0
  %261 = vmatpush1.msra.mxu0 0.0
  %262 = vmatprep.subr.mxu0 0.0
  %263 = vmatpush1.msra.mxu0 0.0
  %264 = vmatprep.subr.mxu0 0.0
  %265 = vmatpush1.msra.mxu0 0.0
  %266 = vmatprep.subr.mxu0 0.0
  %267 = vmatpush1.msra.mxu0 0.0
  %268 = vmatprep.subr.mxu0 0.0
  %269 = vmatpush1.msra.mxu0 0.0
  %270 = vmatprep.subr.mxu0 0.0
  %271 = vmatpush1.msra.mxu0 0.0
  %272 = vmatprep.subr.mxu0 0.0
  %273 = vmatpush1.msra.mxu0 0.0
  %274 = vmatprep.subr.mxu0 0.0
  %275 = vmatpush1.msra.mxu0 0.0
  %276 = vmatprep.subr.mxu0 0.0
  %277 = vmatpush1.msra.mxu0 0.0
  %278 = vmatprep.subr.mxu0 0.0
  %279 = vmatpush1.msra.mxu0 0.0
  %280 = vmatprep.subr.mxu0 0.0
  %281 = vmatpush1.msra.mxu0 0.0
  %282 = vmatprep.subr.mxu0 0.0
  %283 = vmatpush1.msra.mxu0 0.0
  %284 = vmatprep.subr.mxu0 0.0
  %285 = vmatpush1.msra.mxu0 0.0
  %286 = vmatprep.subr.mxu0 0.0
  %287 = vmatpush1.msra.mxu0 0.0
  %288 = vmatprep.subr.mxu0 0.0
  %289 = vmatpush1.msra.mxu0 0.0
  %290 = vmatprep.subr.mxu0 0.0
  %291 = vmatpush1.msra.mxu0 0.0
  %292 = vmatprep.subr.mxu0 0.0
  %293 = vmatpush1.msra.mxu0 0.0
  %294 = vmatprep.subr.mxu0 0.0
  %295 = vmatpush1.msra.mxu0 0.0
  %296 = vmatprep.subr.mxu0 0.0
  %297 = vmatpush1.msra.mxu0 0.0
  %298 = vmatprep.mubr.f32.mxu0 0.0
  %299 = vmatmul.mubr.f32.gmra.mrb[0].mxu0 %v232
  %v300 = vpop.f32.mrb[0].mxu0
  %v301 = vadd.f32 0.0, %v300
  %v302 = vpop.f32.mrb[0].mxu0
  %v303 = vadd.f32 0.0, %v302
  %304 = vdwg.mxu0
  %305 = vmatprep.subr.mxu0 %v220
  %306 = vmatpush1.msra.mxu0 %v219
  %307 = vmatprep.subr.mxu0 %v224
  %308 = vmatpush1.msra.mxu0 %v223
  %309 = vmatprep.subr.mxu0 %v228
  %310 = vmatpush1.msra.mxu0 %v227
  %311 = vmatprep.subr.mxu0 %v208
  %312 = vmatpush1.msra.mxu0 %v206
  %313 = vmatprep.subr.mxu0 0.0
  %314 = vmatpush1.msra.mxu0 0.0
  %315 = vmatprep.subr.mxu0 0.0
  %316 = vmatpush1.msra.mxu0 0.0
  %317 = vmatprep.subr.mxu0 0.0
  %318 = vmatpush1.msra.mxu0 0.0
  %319 = vmatprep.subr.mxu0 0.0
  %320 = vmatpush1.msra.mxu0 0.0
  %321 = vmatprep.subr.mxu0 0.0
  %322 = vmatpush1.msra.mxu0 0.0
  %323 = vmatprep.subr.mxu0 0.0
  %324 = vmatpush1.msra.mxu0 0.0
  %325 = vmatprep.subr.mxu0 0.0
  %326 = vmatpush1.msra.mxu0 0.0
  %327 = vmatprep.subr.mxu0 0.0
  %328 = vmatpush1.msra.mxu0 0.0
  %329 = vmatprep.subr.mxu0 0.0
  %330 = vmatpush1.msra.mxu0 0.0
  %331 = vmatprep.subr.mxu0 0.0
  %332 = vmatpush1.msra.mxu0 0.0
  %333 = vmatprep.subr.mxu0 0.0
  %334 = vmatpush1.msra.mxu0 0.0
  %335 = vmatprep.subr.mxu0 0.0
  %336 = vmatpush1.msra.mxu0 0.0
  %337 = vmatprep.subr.mxu0 0.0
  %338 = vmatpush1.msra.mxu0 0.0
  %339 = vmatprep.subr.mxu0 0.0
  %340 = vmatpush1.msra.mxu0 0.0
  %341 = vmatprep.subr.mxu0 0.0
  %342 = vmatpush1.msra.mxu0 0.0
  %343 = vmatprep.subr.mxu0 0.0
  %344 = vmatpush1.msra.mxu0 0.0
  %345 = vmatprep.subr.mxu0 0.0
  %346 = vmatpush1.msra.mxu0 0.0
  %347 = vmatprep.subr.mxu0 0.0
  %348 = vmatpush1.msra.mxu0 0.0
  %349 = vmatprep.subr.mxu0 0.0
  %350 = vmatpush1.msra.mxu0 0.0
  %351 = vmatprep.subr.mxu0 0.0
  %352 = vmatpush1.msra.mxu0 0.0
  %353 = vmatprep.subr.mxu0 0.0
  %354 = vmatpush1.msra.mxu0 0.0
  %355 = vmatprep.subr.mxu0 0.0
  %356 = vmatpush1.msra.mxu0 0.0
  %357 = vmatprep.subr.mxu0 0.0
  %358 = vmatpush1.msra.mxu0 0.0
  %359 = vmatprep.subr.mxu0 0.0
  %360 = vmatpush1.msra.mxu0 0.0
  %361 = vmatprep.subr.mxu0 0.0
  %362 = vmatpush1.msra.mxu0 0.0
  %363 = vmatprep.subr.mxu0 0.0
  %364 = vmatpush1.msra.mxu0 0.0
  %365 = vmatprep.subr.mxu0 0.0
  %366 = vmatpush1.msra.mxu0 0.0
  %367 = vmatprep.subr.mxu0 0.0
  %368 = vmatpush1.msra.mxu0 0.0
  %369 = vmatprep.mubr.f32.mxu0 0.0
  %370 = vmatmul.mubr.f32.gmra.mrb[0].mxu0 %v232
  %v371 = vpop.f32.mrb[0].mxu0
  %v372 = vadd.f32 0.0, %v371
  %v373 = vpop.f32.mrb[0].mxu0
  %v374 = vadd.f32 0.0, %v373
  %375 = vdwg.mxu0
  %v380 = vcombine.low %v301, %v303
  %v381 = vcombine.low %v372, %v374
  %384 = vst [vmem:[%s3] sm:$0xff] %v380
  %385 = vst [vmem:[%s3 + $0x8] sm:$0xff] %v381
  // Predicated region
  $region14: #{sdc_conv2d1x1s_3_ang2.1} parent=0 // pred_check
    _
  $region15: #{sdc_conv2d1x1s_3_ang2.1} parent=0 // pred_check_branch
    %387 = sbr.rel (0) target = $region17
  $region16: #{sdc_conv2d1x1s_3_ang2.1} parent=0 // pred_region
    _
  $region17: #{sdc_conv2d1x1s_3_ang2.1} parent=0 // pred_fallthru
    _
  // Predicated region
  $region18: #{sdc_conv2d1x1s_3_ang2.1} parent=0 // pred_check
    _
  $region19: #{sdc_conv2d1x1s_3_ang2.1} parent=0 // pred_check_branch
    %389 = sbr.rel (0) target = $region21
  $region20: #{sdc_conv2d1x1s_3_ang2.1} parent=0 // pred_region
    _
  $region21: #{sdc_conv2d1x1s_3_ang2.1} parent=0 // pred_fallthru
    _

</llo_original>
